<compile_context>
chip_gen: v5e
topology: v5e:2x2
jax: 0.10.0
libtpu: 0.0.40
codegen_flags: <defaults>
</compile_context>

<pallas_src>
import math

import jax
import jax.numpy as jnp
from jax.experimental import pallas as pl
from jax.experimental.pallas import tpu as pltpu


def _mlp_kernel(x_ref, w1_ref, b1_ref, w2_ref, b2_ref, w3_ref, b3_ref, o_ref):
    """Feature-major fused MLP: o = W3 @ relu(W2 @ relu(W1 @ x + b1) + b2) + b3."""
    bf16 = jnp.bfloat16
    x = x_ref[...].astype(bf16)                                   # (9, tb)
    # fc1 + ReLU
    h1 = jnp.dot(w1_ref[...].astype(bf16), x,
                 preferred_element_type=jnp.float32)              # (64, tb)
    h1 = jnp.maximum(h1 + b1_ref[...], 0.0)
    # TODO(synk): nn.Dropout(0.2) is identity at inference time; omitted here.
    # fc2 + ReLU
    h2 = jnp.dot(w2_ref[...].astype(bf16), h1.astype(bf16),
                 preferred_element_type=jnp.float32)              # (32, tb)
    h2 = jnp.maximum(h2 + b2_ref[...], 0.0)
    # fc3 (logits, no activation)
    h3 = jnp.dot(w3_ref[...].astype(bf16), h2.astype(bf16),
                 preferred_element_type=jnp.float32)              # (4, tb)
    o_ref[...] = (h3 + b3_ref[...]).astype(o_ref.dtype)


def _round_up(x, m):
    return ((x + m - 1) // m) * m


def accident_severity_forward(x, params, tile_b=8192):
    """x: (B, 9) float32.  Returns logits (B, 4) float32."""
    w1, b1 = params["w1"], params["b1"]   # (64, 9),  (64, 1)
    w2, b2 = params["w2"], params["b2"]   # (32, 64), (32, 1)
    w3, b3 = params["w3"], params["b3"]   # (4, 32),  (4, 1)
    B, F = x.shape
    n_out = w3.shape[0]

    # Feature-major input: batch on the 128-lane axis.
    xt = x.T                               # (9, B)

    # Batch tile on the lane axis: a multiple of 128 (or the whole batch when
    # it is small, so the block equals the full array dim).  For B > 256 cap
    # the tile so there are >= 2 grid steps (feeds both v7x TensorCores).
    if B <= 256:
        tb = B
    else:
        tb = min(_round_up(tile_b, 128), _round_up(pl.cdiv(B, 2), 128))
    num_tiles = pl.cdiv(B, tb)

    def resident(arr):
        # Full-array block, constant index map -> stays resident in VMEM.
        return pl.BlockSpec(arr.shape, lambda i: (0, 0))

    weight_bytes = sum(int(a.size) * 4 for a in (w1, b1, w2, b2, w3, b3))
    flops = 2 * B * (9 * 64 + 64 * 32 + 32 * 4)
    # HBM traffic with the real tiled layout: x^T pads 9 -> 16 sublanes, the
    # output pads 4 -> 8 sublanes, lanes pad to a multiple of 128.
    lane_b = _round_up(B, 128)
    bytes_accessed = (16 + 8) * lane_b * 4 + weight_bytes

    out_t = pl.pallas_call(
        _mlp_kernel,
        out_shape=jax.ShapeDtypeStruct((n_out, B), jnp.float32),
        grid=(num_tiles,),
        in_specs=[
            pl.BlockSpec((F, tb), lambda i: (0, i)),
            resident(w1), resident(b1),
            resident(w2), resident(b2),
            resident(w3), resident(b3),
        ],
        out_specs=pl.BlockSpec((n_out, tb), lambda i: (0, i)),
        compiler_params=pltpu.CompilerParams(
            dimension_semantics=("parallel",),
        ),
        cost_estimate=pl.CostEstimate(
            flops=flops, transcendentals=0, bytes_accessed=bytes_accessed),
    )(xt, w1, b1, w2, b2, w3, b3)

    # Back to PyTorch's (B, 4) convention.
    return out_t.T


def _xavier_uniform(key, fan_out, fan_in):
    # Matches torch.nn.init.xavier_uniform_ on a (fan_out, fan_in) weight.
    bound = math.sqrt(6.0 / (fan_in + fan_out))
    return jax.random.uniform(key, (fan_out, fan_in), jnp.float32, -bound, bound)


def _linear_bias(key, fan_in, fan_out):
    # Matches default nn.Linear bias init: U(-1/sqrt(fan_in), 1/sqrt(fan_in)).
    # Stored as a column (out, 1) so it broadcasts over the lane (batch) axis.
    bound = 1.0 / math.sqrt(fan_in)
    return jax.random.uniform(key, (fan_out, 1), jnp.float32, -bound, bound)


def init_params(key):
    k1, k2, k3, k4, k5, k6 = jax.random.split(key, 6)
    return {
        "w1": _xavier_uniform(k1, 64, 9),    # (64, 9)  PyTorch (out, in)
        "w2": _xavier_uniform(k2, 32, 64),   # (32, 64)
        "w3": _xavier_uniform(k3, 4, 32),    # (4, 32)
        "b1": _linear_bias(k4, 9, 64),       # (64, 1)
        "b2": _linear_bias(k5, 64, 32),      # (32, 1)
        "b3": _linear_bias(k6, 32, 4),       # (4, 1)
    }


if __name__ == "__main__":
    key = jax.random.PRNGKey(0)
    pkey, xkey, xkey2 = jax.random.split(key, 3)
    params = init_params(pkey)

    def ref_forward(xx):
        # Pure-JAX reference matching the kernel's operand precision
        # (bf16 operands, f32 accumulation).
        def bdot(a, b):
            return jnp.dot(a.astype(jnp.bfloat16), b.astype(jnp.bfloat16),
                           preferred_element_type=jnp.float32)
        h = jnp.maximum(bdot(xx, params["w1"].T) + params["b1"].T, 0.0)
        h = jnp.maximum(bdot(h, params["w2"].T) + params["b2"].T, 0.0)
        return bdot(h, params["w3"].T) + params["b3"].T

    # Small-batch smoke test (single tile, tb == B).
    batch = 8
    x = jax.random.normal(xkey, (batch, 9), jnp.float32)
    out = accident_severity_forward(x, params)
    jax.block_until_ready(out)
    assert out.shape == (batch, 4)
    assert jnp.allclose(out, ref_forward(x), atol=5e-3, rtol=5e-3)

    # Multi-tile ragged test: 5 tiles of 128 lanes, last tile partial (88
    # valid rows) -- exercises Pallas's non-divisible last-block masking with
    # no wrapper-side padding pass.
    x_big = jax.random.normal(xkey2, (600, 9), jnp.float32)
    out_big = accident_severity_forward(x_big, params, tile_b=128)
    jax.block_until_ready(out_big)
    assert out_big.shape == (600, 4)
    assert jnp.allclose(out_big, ref_forward(x_big), atol=5e-3, rtol=5e-3)

    print("KERNEL_OK")
</pallas_src>

<mosaic_0001>
module attributes {stable_mosaic.version = 11 : i64} {
  func.func @_mlp_kernel(%arg0: i32, %arg1: memref<9x8xf32, #tpu.memory_space<vmem>>, %arg2: memref<64x9xf32, #tpu.memory_space<vmem>>, %arg3: memref<64x1xf32, #tpu.memory_space<vmem>>, %arg4: memref<32x64xf32, #tpu.memory_space<vmem>>, %arg5: memref<32x1xf32, #tpu.memory_space<vmem>>, %arg6: memref<4x32xf32, #tpu.memory_space<vmem>>, %arg7: memref<4x1xf32, #tpu.memory_space<vmem>>, %arg8: memref<4x8xf32, #tpu.memory_space<vmem>>) attributes {dimension_semantics = [#tpu.dimension_semantics<parallel>], iteration_bounds = array<i64: 1>, scalar_prefetch = 0 : i64, scratch_operands = 0 : i64, tpu.core_type = #tpu.core_type<tc>, window_params = [{transform_indices = @transform_0, window_bounds = array<i64: 9, 8>}, {pipeline_mode = #tpu.pipeline_mode<synchronous>, transform_indices = @transform_1, window_bounds = array<i64: 64, 9>}, {pipeline_mode = #tpu.pipeline_mode<synchronous>, transform_indices = @transform_2, window_bounds = array<i64: 64, 1>}, {pipeline_mode = #tpu.pipeline_mode<synchronous>, transform_indices = @transform_3, window_bounds = array<i64: 32, 64>}, {pipeline_mode = #tpu.pipeline_mode<synchronous>, transform_indices = @transform_4, window_bounds = array<i64: 32, 1>}, {pipeline_mode = #tpu.pipeline_mode<synchronous>, transform_indices = @transform_5, window_bounds = array<i64: 4, 32>}, {pipeline_mode = #tpu.pipeline_mode<synchronous>, transform_indices = @transform_6, window_bounds = array<i64: 4, 1>}, {transform_indices = @transform_7, window_bounds = array<i64: 4, 8>}]} {
    %c0 = arith.constant 0 : index
    %c0_0 = arith.constant 0 : index
    %0 = vector.load %arg1[%c0, %c0_0] : memref<9x8xf32, #tpu.memory_space<vmem>>, vector<9x8xf32>
    %1 = arith.truncf %0 : vector<9x8xf32> to vector<9x8xbf16>
    %c0_1 = arith.constant 0 : index
    %c0_2 = arith.constant 0 : index
    %2 = vector.load %arg2[%c0_1, %c0_2] : memref<64x9xf32, #tpu.memory_space<vmem>>, vector<64x9xf32>
    %3 = arith.truncf %2 : vector<64x9xf32> to vector<64x9xbf16>
    %cst = arith.constant dense<0.000000e+00> : vector<64x8xf32>
    %4 = tpu.matmul %3, %1, %cst {dimension_numbers = #tpu.dot_dimension_numbers<[1], [0], [0], [1], [0, 0, 1, 1], [], []>} : vector<64x9xbf16>, vector<9x8xbf16>, vector<64x8xf32> -> vector<64x8xf32>
    %c0_3 = arith.constant 0 : index
    %c0_4 = arith.constant 0 : index
    %5 = vector.load %arg3[%c0_3, %c0_4] : memref<64x1xf32, #tpu.memory_space<vmem>>, vector<64x1xf32>
    %6 = vector.broadcast %5 : vector<64x1xf32> to vector<64x8xf32>
    %7 = arith.addf %4, %6 : vector<64x8xf32>
    %cst_5 = arith.constant 0.000000e+00 : f32
    %8 = vector.broadcast %cst_5 : f32 to vector<64x8xf32>
    %9 = arith.maximumf %7, %8 : vector<64x8xf32>
    %c0_6 = arith.constant 0 : index
    %c0_7 = arith.constant 0 : index
    %10 = vector.load %arg4[%c0_6, %c0_7] : memref<32x64xf32, #tpu.memory_space<vmem>>, vector<32x64xf32>
    %11 = arith.truncf %10 : vector<32x64xf32> to vector<32x64xbf16>
    %12 = arith.truncf %9 : vector<64x8xf32> to vector<64x8xbf16>
    %cst_8 = arith.constant dense<0.000000e+00> : vector<32x8xf32>
    %13 = tpu.matmul %11, %12, %cst_8 {dimension_numbers = #tpu.dot_dimension_numbers<[1], [0], [0], [1], [0, 0, 1, 1], [], []>} : vector<32x64xbf16>, vector<64x8xbf16>, vector<32x8xf32> -> vector<32x8xf32>
    %c0_9 = arith.constant 0 : index
    %c0_10 = arith.constant 0 : index
    %14 = vector.load %arg5[%c0_9, %c0_10] : memref<32x1xf32, #tpu.memory_space<vmem>>, vector<32x1xf32>
    %15 = vector.broadcast %14 : vector<32x1xf32> to vector<32x8xf32>
    %16 = arith.addf %13, %15 : vector<32x8xf32>
    %cst_11 = arith.constant 0.000000e+00 : f32
    %17 = vector.broadcast %cst_11 : f32 to vector<32x8xf32>
    %18 = arith.maximumf %16, %17 : vector<32x8xf32>
    %c0_12 = arith.constant 0 : index
    %c0_13 = arith.constant 0 : index
    %19 = vector.load %arg6[%c0_12, %c0_13] : memref<4x32xf32, #tpu.memory_space<vmem>>, vector<4x32xf32>
    %20 = arith.truncf %19 : vector<4x32xf32> to vector<4x32xbf16>
    %21 = arith.truncf %18 : vector<32x8xf32> to vector<32x8xbf16>
    %cst_14 = arith.constant dense<0.000000e+00> : vector<4x8xf32>
    %22 = tpu.matmul %20, %21, %cst_14 {dimension_numbers = #tpu.dot_dimension_numbers<[1], [0], [0], [1], [0, 0, 1, 1], [], []>} : vector<4x32xbf16>, vector<32x8xbf16>, vector<4x8xf32> -> vector<4x8xf32>
    %c0_15 = arith.constant 0 : index
    %c0_16 = arith.constant 0 : index
    %23 = vector.load %arg7[%c0_15, %c0_16] : memref<4x1xf32, #tpu.memory_space<vmem>>, vector<4x1xf32>
    %24 = vector.broadcast %23 : vector<4x1xf32> to vector<4x8xf32>
    %25 = arith.addf %22, %24 : vector<4x8xf32>
    %c0_17 = arith.constant 0 : index
    %c0_18 = arith.constant 0 : index
    %26 = vector.load %arg8[%c0_17, %c0_18] : memref<4x8xf32, #tpu.memory_space<vmem>>, vector<4x8xf32>
    tpu.vector_store %arg8[%c0_17, %c0_18], %25 {strides = array<i32>} : memref<4x8xf32, #tpu.memory_space<vmem>>, vector<4x8xf32>,
    return
  }
  func.func @transform_0(%arg0: i32) -> (i32, i32) {
    %c0_i32 = arith.constant 0 : i32
    %c0_i32_0 = arith.constant 0 : i32
    return %c0_i32, %arg0 : i32, i32
  }
  func.func @transform_1(%arg0: i32) -> (i32, i32) {
    %c0_i32 = arith.constant 0 : i32
    %c0_i32_0 = arith.constant 0 : i32
    %c0_i32_1 = arith.constant 0 : i32
    return %c0_i32, %c0_i32_0 : i32, i32
  }
  func.func @transform_2(%arg0: i32) -> (i32, i32) {
    %c0_i32 = arith.constant 0 : i32
    %c0_i32_0 = arith.constant 0 : i32
    %c0_i32_1 = arith.constant 0 : i32
    return %c0_i32, %c0_i32_0 : i32, i32
  }
  func.func @transform_3(%arg0: i32) -> (i32, i32) {
    %c0_i32 = arith.constant 0 : i32
    %c0_i32_0 = arith.constant 0 : i32
    %c0_i32_1 = arith.constant 0 : i32
    return %c0_i32, %c0_i32_0 : i32, i32
  }
  func.func @transform_4(%arg0: i32) -> (i32, i32) {
    %c0_i32 = arith.constant 0 : i32
    %c0_i32_0 = arith.constant 0 : i32
    %c0_i32_1 = arith.constant 0 : i32
    return %c0_i32, %c0_i32_0 : i32, i32
  }
  func.func @transform_5(%arg0: i32) -> (i32, i32) {
    %c0_i32 = arith.constant 0 : i32
    %c0_i32_0 = arith.constant 0 : i32
    %c0_i32_1 = arith.constant 0 : i32
    return %c0_i32, %c0_i32_0 : i32, i32
  }
  func.func @transform_6(%arg0: i32) -> (i32, i32) {
    %c0_i32 = arith.constant 0 : i32
    %c0_i32_0 = arith.constant 0 : i32
    %c0_i32_1 = arith.constant 0 : i32
    return %c0_i32, %c0_i32_0 : i32, i32
  }
  func.func @transform_7(%arg0: i32) -> (i32, i32) {
    %c0_i32 = arith.constant 0 : i32
    %c0_i32_0 = arith.constant 0 : i32
    return %c0_i32, %arg0 : i32, i32
  }
}

</mosaic_0001>

<llo_original>
// kernel: tpu_custom_call.1
$region0: #{tpu_custom_call.1}
  #allocation0 [shape = 'u32[]', space=smem, size = 0x4, offset = 0x4, fixed_abs, tag = 'smem constant byte address 0x4 - core index']
  #allocation1 [shape = 'u32[72,128]{1,0:T(1,128)}', space=vmem, size = 0x9000, scoped, tag = 'internal scratch']
  %s0 = inlined_call_operand.vmem [shape: f32[9,8], index: 0, kind: input, shape index: {}]
  %s1 = inlined_call_operand.vmem [shape: f32[64,9], index: 1, kind: input, shape index: {}]
  %s2 = inlined_call_operand.vmem [shape: f32[64,1], index: 2, kind: input, shape index: {}]
  %s3 = inlined_call_operand.vmem [shape: f32[32,64], index: 3, kind: input, shape index: {}]
  %s4 = inlined_call_operand.vmem [shape: f32[32,1], index: 4, kind: input, shape index: {}]
  %s5 = inlined_call_operand.vmem [shape: f32[4,32], index: 5, kind: input, shape index: {}]
  %s6 = inlined_call_operand.vmem [shape: f32[4,1], index: 6, kind: input, shape index: {}]
  %s7 = inlined_call_operand.hbm [shape: f32[4,8], index: 7, kind: output, shape index: {}]
  %s8 = sld [smem:[#allocation0]]
  $region38: #{tpu_custom_call.1} parent=0
    _
  %s10 = ssub.s32 1, %s8
  %s11 = scalar_select 0, %s10, %s8
  $region1: #{tpu_custom_call.1} parent=0
    #allocation2 [shape = 'u8[2048]{0}', space=vmem, size = 0x800, scoped, tag = 'output window, operand 0, single buffered']
    #allocation3 [shape = 's32[1]{0}', space=sflag, size = 0x4, scoped, tag = 'scoped memory for tpu_custom_call.1']
    %12 = vsyncpa [#allocation3], 0
    // Predicated region
    $region2: #{tpu_custom_call.1} parent=1 // pred_check
      _
    $region3: #{tpu_custom_call.1} parent=1 // pred_check_branch
      %14 = sbr.rel (0) target = $region5
    $region4: #{tpu_custom_call.1} parent=1 // pred_region
      _
    $region5: #{tpu_custom_call.1} parent=1 // pred_fallthru
      _
    // Predicated region
    $region6: #{tpu_custom_call.1} parent=1 // pred_check
      _
    $region7: #{tpu_custom_call.1} parent=1 // pred_check_branch
      %16 = sbr.rel (0) target = $region9
    $region8: #{tpu_custom_call.1} parent=1 // pred_region
      _
    $region9: #{tpu_custom_call.1} parent=1 // pred_fallthru
      _
    // Predicated region
    $region10: #{tpu_custom_call.1} parent=1 // pred_check
      _
    $region11: #{tpu_custom_call.1} parent=1 // pred_check_branch
      %18 = sbr.rel (0) target = $region13
    $region12: #{tpu_custom_call.1} parent=1 // pred_region
      _
    $region13: #{tpu_custom_call.1} parent=1 // pred_fallthru
      _
    // Predicated region
    $region14: #{tpu_custom_call.1} parent=1 // pred_check
      _
    $region15: #{tpu_custom_call.1} parent=1 // pred_check_branch
      %20 = sbr.rel (0) target = $region17
    $region16: #{tpu_custom_call.1} parent=1 // pred_region
      _
    $region17: #{tpu_custom_call.1} parent=1 // pred_fallthru
      _
    // Predicated region
    $region18: #{tpu_custom_call.1} parent=1 // pred_check
      _
    $region19: #{tpu_custom_call.1} parent=1 // pred_check_branch
      %22 = sbr.rel (0) target = $region21
    $region20: #{tpu_custom_call.1} parent=1 // pred_region
      _
    $region21: #{tpu_custom_call.1} parent=1 // pred_fallthru
      _
    // Predicated region
    $region22: #{tpu_custom_call.1} parent=1 // pred_check
      _
    $region23: #{tpu_custom_call.1} parent=1 // pred_check_branch
      %24 = sbr.rel (0) target = $region25
    $region24: #{tpu_custom_call.1} parent=1 // pred_region
      _
    $region25: #{tpu_custom_call.1} parent=1 // pred_fallthru
      _
    // Predicated region
    $region26: #{tpu_custom_call.1} parent=1 // pred_check
      _
    $region27: #{tpu_custom_call.1} parent=1 // pred_check_branch
      %26 = sbr.rel (0) target = $region29
    $region28: #{tpu_custom_call.1} parent=1 // pred_region
      _
    $region29: #{tpu_custom_call.1} parent=1 // pred_fallthru
      _
    %v28 = vld [vmem:[%s0] sm:$0xff]
    %v29 = vld [vmem:[%s0 + $0x8] sm:$0x1]
    %v30 = vpack.c.bf16 %v29, %v28
    %v31 = vld [vmem:[%s1] sm:$0xff]
    %v32 = vld [vmem:[%s1 + $0x8] sm:$0xff]
    %v33 = vld [vmem:[%s1 + $0x10] sm:$0xff]
    %v34 = vld [vmem:[%s1 + $0x18] sm:$0xff]
    %v35 = vld [vmem:[%s1 + $0x20] sm:$0xff]
    %v36 = vld [vmem:[%s1 + $0x28] sm:$0xff]
    %v37 = vld [vmem:[%s1 + $0x30] sm:$0xff]
    %v38 = vld [vmem:[%s1 + $0x38] sm:$0xff]
    %v39 = vpack.c.bf16 %v32, %v31
    %v40 = vpack.c.bf16 %v34, %v33
    %v41 = vpack.c.bf16 %v36, %v35
    %v42 = vpack.c.bf16 %v38, %v37
    %v43 = vld [vmem:[%s2] sm:$0xff]
    %v44 = vld [vmem:[%s2 + $0x8] sm:$0xff]
    %v45 = vld [vmem:[%s2 + $0x10] sm:$0xff]
    %v46 = vld [vmem:[%s2 + $0x18] sm:$0xff]
    %v47 = vld [vmem:[%s2 + $0x20] sm:$0xff]
    %v48 = vld [vmem:[%s2 + $0x28] sm:$0xff]
    %v49 = vld [vmem:[%s2 + $0x30] sm:$0xff]
    %v50 = vld [vmem:[%s2 + $0x38] sm:$0xff]
    %52 = vset.pattern.permute.xlu0 0
    %53 = vperm.xlu0 %52, %v43
    %v54 = vpop.permute.xlu0 %53
    %57 = vset.pattern.permute.xlu0 0
    %58 = vperm.xlu0 %57, %v44
    %v59 = vpop.permute.xlu0 %58
    %62 = vset.pattern.permute.xlu0 0
    %63 = vperm.xlu0 %62, %v45
    %v64 = vpop.permute.xlu0 %63
    %67 = vset.pattern.permute.xlu0 0
    %68 = vperm.xlu0 %67, %v46
    %v69 = vpop.permute.xlu0 %68
    %72 = vset.pattern.permute.xlu0 0
    %73 = vperm.xlu0 %72, %v47
    %v74 = vpop.permute.xlu0 %73
    %77 = vset.pattern.permute.xlu0 0
    %78 = vperm.xlu0 %77, %v48
    %v79 = vpop.permute.xlu0 %78
    %82 = vset.pattern.permute.xlu0 0
    %83 = vperm.xlu0 %82, %v49
    %v84 = vpop.permute.xlu0 %83
    %87 = vset.pattern.permute.xlu0 0
    %88 = vperm.xlu0 %87, %v50
    %v89 = vpop.permute.xlu0 %88
    %vm91 = vcmask 72704
    %v93 = vsel %vm91, %v39, 0
    %v96 = vsel %vm91, %v40, 0
    %v99 = vsel %vm91, %v41, 0
    %v102 = vsel %vm91, %v42, 0
    %vm104 = vcmask 1043456
    %vm105 = vcmask 1044480
    %v106 = vsel %vm104, 4294967295, 65535
    %v107 = vsel %vm105, %v106, 0
    %v109 = vand.u32 %v30, %v107
    %111 = vmatpush.bf16.msra.mxu0 0
    %112 = vmatpush.bf16.msra.mxu0 0
    %113 = vmatpush.bf16.msra.mxu0 0
    %114 = vmatpush.bf16.msra.mxu0 0
    %115 = vmatpush.bf16.msra.mxu0 0
    %116 = vmatpush.bf16.msra.mxu0 0
    %117 = vmatpush.bf16.msra.mxu0 0
    %118 = vmatpush.bf16.msra.mxu0 %v109
    %119 = vmatmul.bf16.gmra.mxu0 %v93
    %v120 = vpop.f32.mrf.mxu0
    %v121 = vadd.f32 %v54, %v120
    %v122 = vpop.f32.mrf.mxu0
    %v123 = vadd.f32 %v59, %v122
    %124 = vmatmul.bf16.gmra.mxu0 %v96
    %v125 = vpop.f32.mrf.mxu0
    %v126 = vadd.f32 %v64, %v125
    %v127 = vpop.f32.mrf.mxu0
    %v128 = vadd.f32 %v69, %v127
    %129 = vmatmul.bf16.gmra.mxu0 %v99
    %v130 = vpop.f32.mrf.mxu0
    %v131 = vadd.f32 %v74, %v130
    %v132 = vpop.f32.mrf.mxu0
    %v133 = vadd.f32 %v79, %v132
    %134 = vmatmul.bf16.gmra.mxu0 %v102
    %v135 = vpop.f32.mrf.mxu0
    %v136 = vadd.f32 %v84, %v135
    %v137 = vpop.f32.mrf.mxu0
    %v138 = vadd.f32 %v89, %v137
    %139 = vdwg.mxu0
    %v140 = vmax.f32 %v121, 0.0
    %v141 = vmax.f32 %v123, 0.0
    %v142 = vmax.f32 %v126, 0.0
    %v143 = vmax.f32 %v128, 0.0
    %v144 = vmax.f32 %v131, 0.0
    %v145 = vmax.f32 %v133, 0.0
    %v146 = vmax.f32 %v136, 0.0
    %v147 = vmax.f32 %v138, 0.0
    %v148 = vld [vmem:[%s3] sm:$0xff]
    %v149 = vld [vmem:[%s3 + $0x8] sm:$0xff]
    %v150 = vld [vmem:[%s3 + $0x10] sm:$0xff]
    %v151 = vld [vmem:[%s3 + $0x18] sm:$0xff]
    %v152 = vpack.c.bf16 %v149, %v148
    %v153 = vpack.c.bf16 %v151, %v150
    %v154 = vpack.c.bf16 %v141, %v140
    %v155 = vpack.c.bf16 %v143, %v142
    %v156 = vpack.c.bf16 %v145, %v144
    %v157 = vpack.c.bf16 %v147, %v146
    %v158 = vld [vmem:[%s4] sm:$0xff]
    %v159 = vld [vmem:[%s4 + $0x8] sm:$0xff]
    %v160 = vld [vmem:[%s4 + $0x10] sm:$0xff]
    %v161 = vld [vmem:[%s4 + $0x18] sm:$0xff]
    %163 = vset.pattern.permute.xlu0 0
    %164 = vperm.xlu0 %163, %v158
    %v165 = vpop.permute.xlu0 %164
    %168 = vset.pattern.permute.xlu0 0
    %169 = vperm.xlu0 %168, %v159
    %v170 = vpop.permute.xlu0 %169
    %173 = vset.pattern.permute.xlu0 0
    %174 = vperm.xlu0 %173, %v160
    %v175 = vpop.permute.xlu0 %174
    %178 = vset.pattern.permute.xlu0 0
    %179 = vperm.xlu0 %178, %v161
    %v180 = vpop.permute.xlu0 %179
    %vm182 = vcmask 523264
    %v184 = vsel %vm182, %v152, 0
    %v187 = vsel %vm182, %v153, 0
    %189 = vmatpush.bf16.msra.mxu0 0
    %190 = vmatpush.bf16.msra.mxu0 0
    %191 = vmatpush.bf16.msra.mxu0 0
    %192 = vmatpush.bf16.msra.mxu0 0
    %193 = vmatpush.bf16.msra.mxu0 %v157
    %194 = vmatpush.bf16.msra.mxu0 %v156
    %195 = vmatpush.bf16.msra.mxu0 %v155
    %196 = vmatpush.bf16.msra.mxu0 %v154
    %197 = vmatmul.bf16.gmra.mxu0 %v184
    %v198 = vpop.f32.mrf.mxu0
    %v199 = vadd.f32 %v165, %v198
    %v200 = vpop.f32.mrf.mxu0
    %v201 = vadd.f32 %v170, %v200
    %202 = vmatmul.bf16.gmra.mxu0 %v187
    %v203 = vpop.f32.mrf.mxu0
    %v204 = vadd.f32 %v175, %v203
    %v205 = vpop.f32.mrf.mxu0
    %v206 = vadd.f32 %v180, %v205
    %207 = vdwg.mxu0
    %v208 = vmax.f32 %v199, 0.0
    %v209 = vmax.f32 %v201, 0.0
    %v210 = vmax.f32 %v204, 0.0
    %v211 = vmax.f32 %v206, 0.0
    %v212 = vld [vmem:[%s5] sm:$0xf]
    %v213 = vpack.c.bf16 %v212, %v212
    %v214 = vpack.c.bf16 %v209, %v208
    %v215 = vpack.c.bf16 %v211, %v210
    %v216 = vld [vmem:[%s6] sm:$0xf]
    %218 = vset.pattern.permute.xlu0 0
    %219 = vperm.xlu0 %218, %v216
    %v220 = vpop.permute.xlu0 %219
    %vm222 = vcmask 261120
    %v224 = vsel %vm222, %v213, 0
    %226 = vmatpush.bf16.msra.mxu0 0
    %227 = vmatpush.bf16.msra.mxu0 0
    %228 = vmatpush.bf16.msra.mxu0 0
    %229 = vmatpush.bf16.msra.mxu0 0
    %230 = vmatpush.bf16.msra.mxu0 0
    %231 = vmatpush.bf16.msra.mxu0 0
    %232 = vmatpush.bf16.msra.mxu0 %v215
    %233 = vmatpush.bf16.msra.mxu0 %v214
    %234 = vmatmul.bf16.gmra.mxu0 %v224
    %v235 = vpop.f32.mrf.mxu0
    %v236 = vadd.f32 %v220, %v235
    %v237 = vpop.f32.mrf.mxu0
    %238 = vdwg.mxu0
    %vm239 = vcmask 60416
    %240 = vst.msk [vmem:[#allocation2] sm:$0xf] %vm239, %v236
    // Predicated region
    $region30: #{tpu_custom_call.1} parent=1 // pred_check
      _
    $region31: #{tpu_custom_call.1} parent=1 // pred_check_branch
      %242 = sbr.rel (0) target = $region33
    $region32: #{tpu_custom_call.1} parent=1 // pred_region
      %244 = vsyncadd [#allocation3], 0
      %s246 = sshll.u32 [#allocation2], 4
      %s247 = int_to_ptr.vmem [resolvable:$true] %s246
      %s248 = sshll.u32 %s7, 4
      %s249 = int_to_ptr.hbm [resolvable:$true] %s248
      %251 = dma.vmem_to_hbm [thread:$0]  %s247, 64, %s249, [#allocation3]
    $region33: #{tpu_custom_call.1} parent=1 // pred_fallthru
      _
    // Predicated region
    $region34: #{tpu_custom_call.1} parent=1 // pred_check
      _
    $region35: #{tpu_custom_call.1} parent=1 // pred_check_branch
      %253 = sbr.rel (0) target = $region37
    $region36: #{tpu_custom_call.1} parent=1 // pred_region
      %255 = dma.done [#allocation3], 64
    $region37: #{tpu_custom_call.1} parent=1 // pred_fallthru
      _
    %256 = vsyncpa [#allocation3], 1

</llo_original>
